<compile_context>
chip_gen: v7x
topology: tpu7x:2x2x1
jax: 0.10.0
libtpu: 0.0.40
codegen_flags: <defaults>
</compile_context>

<pallas_src>
import functools

import jax
import jax.numpy as jnp
from jax import lax
from jax.experimental import pallas as pl
from jax.experimental.pallas import tpu as pltpu


def _round_up(v: int, m: int) -> int:
    return (v + m - 1) // m * m


def _dwconv1d_kernel(xa_ref, xb_ref, w_ref, o_ref, *, K: int, stride: int):
    """Compute one (channels, L_out-tile) output block of a depthwise conv1d.

    xa_ref, xb_ref : (Cp, TLi)  adjacent input tiles t and t+1 (halo)
    w_ref          : (Cp, K)    per-channel filter taps
    o_ref          : (Cp, TLo)  output tile, TLi = TLo * stride
    """
    TLo = o_ref.shape[-1]
    span = (TLo - 1) * stride + 1

    # Stitch current tile + halo tile once; every tap is then a static lane
    # slice of this in-VMEM value.
    x = jnp.concatenate([xa_ref[...], xb_ref[...]], axis=-1).astype(jnp.float32)
    w = w_ref[...].astype(jnp.float32)

    acc = jnp.zeros(o_ref.shape, jnp.float32)
    for k in range(K):                         # K is small & static: unrolled
        xk = x[:, k:k + span:stride]           # (Cp, TLo) shifted window
        acc = acc + xk * w[:, k:k + 1]         # per-channel broadcast FMA
    o_ref[...] = acc.astype(o_ref.dtype)


def depthwise_conv1d(x, weight, *, stride: int = 1, padding: int = 0,
                     block_l: int = 512):
    """Depthwise Conv1d: torch.nn.Conv1d(C_in, C_out, K, groups=C_in, bias=False).

    x:      (B, C_in, L)
    weight: (C_out, 1, K) or (C_out, K) with C_out % C_in == 0
    returns (B, C_out, L_out), L_out = (L + 2*padding - K)//stride + 1
    """
    B, C_in, L = x.shape
    if weight.ndim == 3:
        weight = weight[:, 0, :]
    C_out, K = weight.shape
    assert C_out % C_in == 0, "out_channels must be a multiple of in_channels"
    mult = C_out // C_in

    L_out = (L + 2 * padding - K) // stride + 1
    assert L_out > 0, "invalid conv geometry"

    # Depth multiplier > 1: replicate input channels so each output channel
    # has its own input row (pure per-channel conv inside the kernel).
    x_exp = jnp.repeat(x, mult, axis=1) if mult > 1 else x

    # ---- tiling geometry -----------------------------------------------------
    sub = 16 if x.dtype == jnp.bfloat16 else 8       # sublane packing
    Cp = _round_up(C_out, sub)

    # Lane-dense output tiles: multiple of 128, up to block_l wide.
    TLo = min(block_l, _round_up(L_out, 128))
    num_l = pl.cdiv(L_out, TLo)
    L_out_pad = num_l * TLo

    # Input tiles are non-overlapping TLi-wide slabs; kernel reads tile t and
    # t+1 to cover the (TLo-1)*stride + K - 1 window (halo).
    TLi = TLo * stride
    assert K <= TLi, "kernel_size must not exceed one input tile"
    n_in_blocks = max(num_l + 1, pl.cdiv(padding + L, TLi))
    L_in_pad = n_in_blocks * TLi

    x_p = jnp.pad(
        x_exp,
        ((0, 0), (0, Cp - C_out), (padding, L_in_pad - padding - L)),
    )
    w_p = jnp.pad(weight, ((0, Cp - C_out), (0, 0)))

    kernel = functools.partial(_dwconv1d_kernel, K=K, stride=stride)
    itemsize = x.dtype.itemsize

    out = pl.pallas_call(
        kernel,
        out_shape=jax.ShapeDtypeStruct((B, Cp, L_out_pad), x.dtype),
        grid_spec=pltpu.PrefetchScalarGridSpec(
            num_scalar_prefetch=0,
            grid=(B, num_l),
            in_specs=[
                pl.BlockSpec((pl.Squeezed(), Cp, TLi), lambda b, t: (b, 0, t)),
                pl.BlockSpec((pl.Squeezed(), Cp, TLi), lambda b, t: (b, 0, t + 1)),
                pl.BlockSpec((Cp, K), lambda b, t: (0, 0)),
            ],
            out_specs=pl.BlockSpec((pl.Squeezed(), Cp, TLo), lambda b, t: (b, 0, t)),
        ),
        compiler_params=pltpu.CompilerParams(
            dimension_semantics=("parallel", "parallel"),
        ),
        cost_estimate=pl.CostEstimate(
            flops=2 * B * Cp * L_out_pad * K,
            transcendentals=0,
            bytes_accessed=itemsize * (2 * B * Cp * L_in_pad
                                       + B * Cp * L_out_pad
                                       + Cp * K),
        ),
    )(x_p, x_p, w_p)

    return out[:, :C_out, :L_out]


if __name__ == "__main__":
    key = jax.random.PRNGKey(0)
    # Small shapes: batch=2, in_channels=4, depth multiplier=2 -> out_channels=8,
    # length=64, kernel_size=3, "same" padding (Conformer-style, stride=1).
    B, C_in, L = 2, 4, 64
    K, stride, padding = 3, 1, 1
    mult = 2
    C_out = C_in * mult

    kx, kw = jax.random.split(key)
    x = jax.random.normal(kx, (B, C_in, L), dtype=jnp.float32)
    w = jax.random.normal(kw, (C_out, 1, K), dtype=jnp.float32)

    out = depthwise_conv1d(x, w, stride=stride, padding=padding)
    jax.block_until_ready(out)

    # Reference: same semantics as torch.nn.Conv1d(groups=C_in, bias=False).
    ref = lax.conv_general_dilated(
        x, w,
        window_strides=(stride,),
        padding=[(padding, padding)],
        dimension_numbers=("NCH", "OIH", "NCH"),
        feature_group_count=C_in,
    )

    L_out = (L + 2 * padding - K) // stride + 1
    assert out.shape == (B, C_out, L_out), out.shape
    assert jnp.allclose(out, ref, atol=1e-5, rtol=1e-5), \
        float(jnp.max(jnp.abs(out - ref)))

    print("KERNEL_OK")
</pallas_src>

<mosaic_0001>
module attributes {stable_mosaic.version = 11 : i64} {
  func.func @_dwconv1d_kernel(%arg0: i32, %arg1: i32, %arg2: memref<1x8x128xf32, #tpu.memory_space<vmem>>, %arg3: memref<1x8x128xf32, #tpu.memory_space<vmem>>, %arg4: memref<8x3xf32, #tpu.memory_space<vmem>>, %arg5: memref<1x8x128xf32, #tpu.memory_space<vmem>>) attributes {dimension_semantics = [#tpu.dimension_semantics<parallel>, #tpu.dimension_semantics<parallel>], iteration_bounds = array<i64: 2, 1>, scalar_prefetch = 0 : i64, scratch_operands = 0 : i64, tpu.core_type = #tpu.core_type<tc>, window_params = [{transform_indices = @transform_0, window_bounds = array<i64: 1, 8, 128>}, {transform_indices = @transform_1, window_bounds = array<i64: 1, 8, 128>}, {pipeline_mode = #tpu.pipeline_mode<synchronous>, transform_indices = @transform_2, window_bounds = array<i64: 8, 3>}, {transform_indices = @transform_3, window_bounds = array<i64: 1, 8, 128>}]} {
    %c0 = arith.constant 0 : index
    %c0_0 = arith.constant 0 : index
    %c0_1 = arith.constant 0 : index
    %0 = vector.load %arg2[%c0, %c0_0, %c0_1] : memref<1x8x128xf32, #tpu.memory_space<vmem>>, vector<1x8x128xf32>
    %1 = vector.shape_cast %0 : vector<1x8x128xf32> to vector<8x128xf32>
    %c0_2 = arith.constant 0 : index
    %c0_3 = arith.constant 0 : index
    %c0_4 = arith.constant 0 : index
    %2 = vector.load %arg3[%c0_2, %c0_3, %c0_4] : memref<1x8x128xf32, #tpu.memory_space<vmem>>, vector<1x8x128xf32>
    %3 = vector.shape_cast %2 : vector<1x8x128xf32> to vector<8x128xf32>
    %4 = tpu.concatenate %1, %3 in 1 : vector<8x128xf32>, vector<8x128xf32> -> vector<8x256xf32>
    %c0_5 = arith.constant 0 : index
    %c0_6 = arith.constant 0 : index
    %5 = vector.load %arg4[%c0_5, %c0_6] : memref<8x3xf32, #tpu.memory_space<vmem>>, vector<8x3xf32>
    %cst = arith.constant 0.000000e+00 : f32
    %6 = vector.broadcast %cst : f32 to vector<8x128xf32>
    %7 = vector.extract_strided_slice %4 {offsets = [0, 0], sizes = [8, 128], strides = [1, 1]} : vector<8x256xf32> to vector<8x128xf32>
    %8 = vector.extract_strided_slice %5 {offsets = [0, 0], sizes = [8, 1], strides = [1, 1]} : vector<8x3xf32> to vector<8x1xf32>
    %9 = vector.broadcast %8 : vector<8x1xf32> to vector<8x128xf32>
    %10 = arith.mulf %7, %9 : vector<8x128xf32>
    %11 = arith.addf %6, %10 : vector<8x128xf32>
    %12 = vector.extract_strided_slice %4 {offsets = [0, 1], sizes = [8, 128], strides = [1, 1]} : vector<8x256xf32> to vector<8x128xf32>
    %13 = vector.extract_strided_slice %5 {offsets = [0, 1], sizes = [8, 1], strides = [1, 1]} : vector<8x3xf32> to vector<8x1xf32>
    %14 = vector.broadcast %13 : vector<8x1xf32> to vector<8x128xf32>
    %15 = arith.mulf %12, %14 : vector<8x128xf32>
    %16 = arith.addf %11, %15 : vector<8x128xf32>
    %17 = vector.extract_strided_slice %4 {offsets = [0, 2], sizes = [8, 128], strides = [1, 1]} : vector<8x256xf32> to vector<8x128xf32>
    %18 = vector.extract_strided_slice %5 {offsets = [0, 2], sizes = [8, 1], strides = [1, 1]} : vector<8x3xf32> to vector<8x1xf32>
    %19 = vector.broadcast %18 : vector<8x1xf32> to vector<8x128xf32>
    %20 = arith.mulf %17, %19 : vector<8x128xf32>
    %21 = arith.addf %16, %20 : vector<8x128xf32>
    %c0_7 = arith.constant 0 : index
    %c0_8 = arith.constant 0 : index
    %c0_9 = arith.constant 0 : index
    %22 = vector.load %arg5[%c0_7, %c0_8, %c0_9] : memref<1x8x128xf32, #tpu.memory_space<vmem>>, vector<1x8x128xf32>
    %23 = vector.shape_cast %22 : vector<1x8x128xf32> to vector<8x128xf32>
    %24 = vector.shape_cast %21 : vector<8x128xf32> to vector<1x8x128xf32>
    tpu.vector_store %arg5[%c0_7, %c0_8, %c0_9], %24 {strides = array<i32>} : memref<1x8x128xf32, #tpu.memory_space<vmem>>, vector<1x8x128xf32>,
    return
  }
  func.func @transform_0(%arg0: i32, %arg1: i32) -> (i32, i32, i32) {
    %c0_i32 = arith.constant 0 : i32
    %c0_i32_0 = arith.constant 0 : i32
    return %arg0, %c0_i32, %arg1 : i32, i32, i32
  }
  func.func @transform_1(%arg0: i32, %arg1: i32) -> (i32, i32, i32) {
    %c1_i32 = arith.constant 1 : i32
    %0 = arith.addi %arg1, %c1_i32 : i32
    %c0_i32 = arith.constant 0 : i32
    %c0_i32_0 = arith.constant 0 : i32
    return %arg0, %c0_i32, %0 : i32, i32, i32
  }
  func.func @transform_2(%arg0: i32, %arg1: i32) -> (i32, i32) {
    %c0_i32 = arith.constant 0 : i32
    %c0_i32_0 = arith.constant 0 : i32
    %c0_i32_1 = arith.constant 0 : i32
    return %c0_i32, %c0_i32_0 : i32, i32
  }
  func.func @transform_3(%arg0: i32, %arg1: i32) -> (i32, i32, i32) {
    %c0_i32 = arith.constant 0 : i32
    %c0_i32_0 = arith.constant 0 : i32
    return %arg0, %c0_i32, %arg1 : i32, i32, i32
  }
}

</mosaic_0001>

<llo_original>
// kernel: tpu_custom_call.1
$region0: #{tpu_custom_call.1}
  #allocation0 [shape = 'u32[]', space=smem, size = 0x4, offset = 0x4, fixed_abs, tag = 'smem constant byte address 0x4 - core index']
  #allocation1 [shape = 'u32[144,128]{1,0:T(1,128)}', space=vmem, size = 0x12000, scoped, tag = 'internal scratch']
  %s0 = inlined_call_operand.hbm [shape: f32[2,8,256], index: 0, kind: input, shape index: {}]
  %s1 = inlined_call_operand.hbm [shape: f32[2,8,256], index: 1, kind: input, shape index: {}]
  %s2 = inlined_call_operand.vmem [shape: f32[8,3], index: 2, kind: input, shape index: {}]
  %s3 = inlined_call_operand.hbm [shape: f32[2,8,128], index: 3, kind: output, shape index: {}]
  %s4 = sld [smem:[#allocation0]]
  $region53: #{tpu_custom_call.1} parent=0
    _
  %s6 = ssub.s32 1, %s4
  %s7 = scalar_select 0, %s6, %s4
  $region1: #{tpu_custom_call.1} parent=0
    #allocation2 [shape = 'u8[8192]{0}', space=vmem, size = 0x2000, scoped, tag = 'input window, operand 0']
    #allocation3 [shape = 's32[2]{0}', space=sflag, size = 0x8, scoped, tag = 'scoped memory for tpu_custom_call.1']
    #allocation4 [shape = 's32[2]{0}', space=sflag, size = 0x8, scoped, tag = 'scoped memory for tpu_custom_call.1']
    #allocation5 [shape = 'u8[8192]{0}', space=vmem, size = 0x2000, scoped, tag = 'input window, operand 1']
    #allocation6 [shape = 's32[2]{0}', space=sflag, size = 0x8, scoped, tag = 'scoped memory for tpu_custom_call.1']
    #allocation7 [shape = 'u8[8192]{0}', space=vmem, size = 0x2000, scoped, tag = 'output window, operand 0']
    %8 = vsyncpa [#allocation3], 0
    %s9 = scalar_lea.sflag [#allocation3], 1
    %10 = vsyncpa %s9, 0
    %11 = vsyncpa [#allocation6], 0
    %s12 = scalar_lea.sflag [#allocation6], 1
    %13 = vsyncpa %s12, 0
    %14 = vsyncpa [#allocation4], 0
    %s15 = scalar_lea.sflag [#allocation4], 1
    %16 = vsyncpa %s15, 0
    loop: start=0, step=1, limit=4
    $region2: #{tpu_custom_call.1} parent=1 // loop_pre_header
      _
    $region3: #{tpu_custom_call.1} parent=1 // loop_header
      %s18 = sphi 0, %s22
      %p19 = scmp.ge.s32.totalorder %s18, 4
      %s25 = sphi 0, %s37
      %s26 = sphi 0, %s33
      %s27 = sphi 0, %s25
      %s28 = sphi 0, %s26
      %s29 = sphi 0, %s27
      %s30 = sphi 0, %s28
      %s42 = sphi 0, %s44
      %s45 = sphi 0, %s42
      %s46 = sphi 0, %s45
      %s62 = sphi 0, %s46
      %s72 = sphi 0, %s74
      %s75 = sphi 0, %s72
      %s76 = sphi 0, %s75
      %s92 = sphi 0, %s76
      %s96 = sphi 0, %s96
      %s98 = sphi 0, %s96
      %s99 = sphi 0, %s98
      %s113 = sphi 0, %s99
      %s121 = sphi 0, %s123
      %s124 = sphi 0, %s121
      %s125 = sphi 0, %s124
      %s141 = sphi 0, %s125
    $region4: #{tpu_custom_call.1} parent=1 // loop_header_branch
      %21 = sbr.rel (%p19) target = $region8
    $region5: #{tpu_custom_call.1} parent=1 // loop_body
      %s23 = ssub.s32 %s18, 1
      %s24 = ssub.s32 %s18, 2
      %s31 = sadd.s32 1, %s26
      %p32 = scmp.ge.s32.totalorder %s31, 1
      %s33 = scalar_select %p32, 0, %s31
      %s34 = sadd.s32 1, %s25
      %s35 = scalar_select %p32, %s34, %s25
      %p36 = scmp.ge.s32.totalorder %s35, 2
      %s37 = scalar_select %p36, 0, %s35
      %s38 = ssub.s32 %s25, %s37
      %s39 = ssub.s32 %s26, %s33
      %s40 = sor.u32 %s38, %s39
      %p41 = scmp.eq.s32.totalorder %s40, 0
      %s43 = sadd.s32 %s42, 1
      %s44 = scalar_select %p41, %s42, %s43
      %p47 = pneg %p41
      %p48 = scmp.eq.s32.totalorder %s18, 1
      %p49 = por %p47, %p48
      %p50 = scmp.ne.s32.totalorder %s42, %s45
      %p51 = scmp.eq.s32.totalorder %s18, 0
      %p52 = por %p50, %p51
      %p53 = scmp.ne.s32.totalorder %s42, %s45
      %p54 = scmp.eq.s32.totalorder %s23, 1
      %p55 = por %p53, %p54
      %p56 = scmp.ne.s32.totalorder %s45, %s46
      %p57 = scmp.eq.s32.totalorder %s23, 0
      %p58 = por %p56, %p57
      %p59 = scmp.ne.s32.totalorder %s45, %s46
      %p60 = scmp.eq.s32.totalorder %s24, 1
      %p61 = por %p59, %p60
      %p63 = scmp.ne.s32.totalorder %s46, %s62
      %p64 = scmp.eq.s32.totalorder %s24, 0
      %p65 = por %p63, %p64
      %s66 = sadd.s32 %s26, 1
      %s67 = sadd.s32 %s33, 1
      %s68 = ssub.s32 %s25, %s37
      %s69 = ssub.s32 %s66, %s67
      %s70 = sor.u32 %s68, %s69
      %p71 = scmp.eq.s32.totalorder %s70, 0
      %s73 = sadd.s32 %s72, 1
      %s74 = scalar_select %p71, %s72, %s73
      %p77 = pneg %p71
      %p78 = scmp.eq.s32.totalorder %s18, 1
      %p79 = por %p77, %p78
      %p80 = scmp.ne.s32.totalorder %s72, %s75
      %p81 = scmp.eq.s32.totalorder %s18, 0
      %p82 = por %p80, %p81
      %p83 = scmp.ne.s32.totalorder %s72, %s75
      %p84 = scmp.eq.s32.totalorder %s23, 1
      %p85 = por %p83, %p84
      %p86 = scmp.ne.s32.totalorder %s75, %s76
      %p87 = scmp.eq.s32.totalorder %s23, 0
      %p88 = por %p86, %p87
      %p89 = scmp.ne.s32.totalorder %s75, %s76
      %p90 = scmp.eq.s32.totalorder %s24, 1
      %p91 = por %p89, %p90
      %p93 = scmp.ne.s32.totalorder %s76, %s92
      %p94 = scmp.eq.s32.totalorder %s24, 0
      %p95 = por %p93, %p94
      %s97 = sadd.s32 %s96, 1
      %p100 = scmp.eq.s32.totalorder %s18, 1
      %p101 = scmp.ne.s32.totalorder %s96, %s98
      %p102 = scmp.eq.s32.totalorder %s18, 0
      %p103 = por %p101, %p102
      %p104 = scmp.ne.s32.totalorder %s96, %s98
      %p105 = scmp.eq.s32.totalorder %s23, 1
      %p106 = por %p104, %p105
      %p107 = scmp.ne.s32.totalorder %s98, %s99
      %p108 = scmp.eq.s32.totalorder %s23, 0
      %p109 = por %p107, %p108
      %p110 = scmp.ne.s32.totalorder %s98, %s99
      %p111 = scmp.eq.s32.totalorder %s24, 1
      %p112 = por %p110, %p111
      %p114 = scmp.ne.s32.totalorder %s99, %s113
      %p115 = scmp.eq.s32.totalorder %s24, 0
      %p116 = por %p114, %p115
      %s117 = ssub.s32 %s25, %s37
      %s118 = ssub.s32 %s26, %s33
      %s119 = sor.u32 %s117, %s118
      %p120 = scmp.eq.s32.totalorder %s119, 0
      %s122 = sadd.s32 %s121, 1
      %s123 = scalar_select %p120, %s121, %s122
      %p126 = pneg %p120
      %p127 = scmp.eq.s32.totalorder %s18, 1
      %p128 = por %p126, %p127
      %p129 = scmp.ne.s32.totalorder %s121, %s124
      %p130 = scmp.eq.s32.totalorder %s18, 0
      %p131 = por %p129, %p130
      %p132 = scmp.ne.s32.totalorder %s121, %s124
      %p133 = scmp.eq.s32.totalorder %s23, 1
      %p134 = por %p132, %p133
      %p135 = scmp.ne.s32.totalorder %s124, %s125
      %p136 = scmp.eq.s32.totalorder %s23, 0
      %p137 = por %p135, %p136
      %p138 = scmp.ne.s32.totalorder %s124, %s125
      %p139 = scmp.eq.s32.totalorder %s24, 1
      %p140 = por %p138, %p139
      %p142 = scmp.ne.s32.totalorder %s125, %s141
      %p143 = scmp.eq.s32.totalorder %s24, 0
      %p144 = por %p142, %p143
      %p145 = scmp.le.s32.totalorder 1, %s18
      %p146 = scmp.lt.s32.totalorder %s18, 3
      %p147 = pnand %p145, %p146
      %p148 = pneg %p147
      // Predicated region
      $region9: #{tpu_custom_call.1} parent=5 // pred_check
        _
      $region10: #{tpu_custom_call.1} parent=5 // pred_check_branch
        %150 = sbr.rel (%p147) target = $region12
      $region11: #{tpu_custom_call.1} parent=5 // pred_region
        %s151 = ssub.s32 %s18, 1
        // Predicated region
        $region13: #{tpu_custom_call.1} parent=11 // pred_check
          %p152 = pneg %p109
        $region14: #{tpu_custom_call.1} parent=11 // pred_check_branch
          %154 = sbr.rel (%p152) target = $region16
        $region15: #{tpu_custom_call.1} parent=11 // pred_region
          _
        $region16: #{tpu_custom_call.1} parent=11 // pred_fallthru
          _
      $region12: #{tpu_custom_call.1} parent=5 // pred_fallthru
        _
      %p155 = scmp.lt.s32.totalorder %s18, 2
      // Predicated region
      $region17: #{tpu_custom_call.1} parent=5 // pred_check
        %p156 = pneg %p155
      $region18: #{tpu_custom_call.1} parent=5 // pred_check_branch
        %158 = sbr.rel (%p156) target = $region20
      $region19: #{tpu_custom_call.1} parent=5 // pred_region
        // Predicated region
        $region21: #{tpu_custom_call.1} parent=19 // pred_check
          %p159 = pneg %p52
        $region22: #{tpu_custom_call.1} parent=19 // pred_check_branch
          %161 = sbr.rel (%p159) target = $region24
        $region23: #{tpu_custom_call.1} parent=19 // pred_region
          %s162 = sand.u32 %s42, 1
          %s163 = scalar_lea.sflag [#allocation3], %s162
          %s164 = sand.u32 %s42, 1
          %s165 = smul.addr %s164, 8
          %s166 = scalar_lea.vmem [#allocation2], %s165
          %s168 = ssub.s32 128, 128
          %169 = vsyncadd %s163, %s168
          %s170 = smul.addr %s25, 2
          %s171 = sadd.s32 %s26, %s170
          %s172 = smul.addr %s171, 128
          %s173 = scalar_lea.hbm %s0, %s172
          %s175 = sshll.u32 %s166, 4
          %s176 = int_to_ptr.vmem [resolvable:$true] %s175
          %178 = dma.hbm_to_vmem [thread:$0]  %s173, 128, %s176, %s163
        $region24: #{tpu_custom_call.1} parent=19 // pred_fallthru
          _
        // Predicated region
        $region25: #{tpu_custom_call.1} parent=19 // pred_check
          %p179 = pneg %p82
        $region26: #{tpu_custom_call.1} parent=19 // pred_check_branch
          %181 = sbr.rel (%p179) target = $region28
        $region27: #{tpu_custom_call.1} parent=19 // pred_region
          %s182 = sand.u32 %s72, 1
          %s183 = scalar_lea.sflag [#allocation6], %s182
          %s184 = sand.u32 %s72, 1
          %s185 = smul.addr %s184, 8
          %s186 = scalar_lea.vmem [#allocation5], %s185
          %s187 = sadd.s32 %s26, 1
          %s189 = ssub.s32 128, 128
          %190 = vsyncadd %s183, %s189
          %s191 = smul.addr %s25, 2
          %s192 = sadd.s32 %s187, %s191
          %s193 = smul.addr %s192, 128
          %s194 = scalar_lea.hbm %s1, %s193
          %s196 = sshll.u32 %s186, 4
          %s197 = int_to_ptr.vmem [resolvable:$true] %s196
          %199 = dma.hbm_to_vmem [thread:$0]  %s194, 128, %s197, %s183
        $region28: #{tpu_custom_call.1} parent=19 // pred_fallthru
          _
      $region20: #{tpu_custom_call.1} parent=5 // pred_fallthru
        _
      %p200 = scmp.le.s32.totalorder 1, %s18
      %p201 = scmp.lt.s32.totalorder %s18, 3
      %p202 = pnand %p200, %p201
      %p203 = pneg %p202
      // Predicated region
      $region29: #{tpu_custom_call.1} parent=5 // pred_check
        _
      $region30: #{tpu_custom_call.1} parent=5 // pred_check_branch
        %205 = sbr.rel (%p202) target = $region32
      $region31: #{tpu_custom_call.1} parent=5 // pred_region
        %s206 = ssub.s32 %s18, 1
        %s207 = sand.u32 %s45, 1
        %s208 = scalar_lea.sflag [#allocation3], %s207
        %s209 = sand.u32 %s45, 1
        %s210 = smul.addr %s209, 8
        %s211 = scalar_lea.vmem [#allocation2], %s210
        // Predicated region
        $region33: #{tpu_custom_call.1} parent=31 // pred_check
          %p212 = pneg %p58
        $region34: #{tpu_custom_call.1} parent=31 // pred_check_branch
          %214 = sbr.rel (%p212) target = $region36
        $region35: #{tpu_custom_call.1} parent=31 // pred_region
          %215 = dma.done %s208, 128
        $region36: #{tpu_custom_call.1} parent=31 // pred_fallthru
          _
        %s216 = sand.u32 %s75, 1
        %s217 = scalar_lea.sflag [#allocation6], %s216
        %s218 = sand.u32 %s75, 1
        %s219 = smul.addr %s218, 8
        %s220 = scalar_lea.vmem [#allocation5], %s219
        // Predicated region
        $region37: #{tpu_custom_call.1} parent=31 // pred_check
          %p221 = pneg %p88
        $region38: #{tpu_custom_call.1} parent=31 // pred_check_branch
          %223 = sbr.rel (%p221) target = $region40
        $region39: #{tpu_custom_call.1} parent=31 // pred_region
          %224 = dma.done %s217, 128
        $region40: #{tpu_custom_call.1} parent=31 // pred_fallthru
          _
        %s225 = sand.u32 %s45, 1
        %s226 = scalar_lea.sflag [#allocation3], %s225
        %s227 = sand.u32 %s45, 1
        %s228 = smul.addr %s227, 8
        %s229 = scalar_lea.vmem [#allocation2], %s228
        %p230 = pneg %p58
        %p231 = pneg %p55
        %s232 = sand.u32 %s75, 1
        %s233 = scalar_lea.sflag [#allocation6], %s232
        %s234 = sand.u32 %s75, 1
        %s235 = smul.addr %s234, 8
        %s236 = scalar_lea.vmem [#allocation5], %s235
        %p237 = pneg %p88
        %p238 = pneg %p85
        %p239 = pneg %p109
        %p240 = pneg %p106
        %p241 = pneg %p137
        %p242 = pneg %p134
        %s243 = sand.u32 %s124, 1
        %s244 = scalar_lea.sflag [#allocation4], %s243
        %s245 = sand.u32 %s124, 1
        %s246 = smul.addr %s245, 8
        %s247 = scalar_lea.vmem [#allocation7], %s246
        %s248 = sadd.s32 %s28, 1
        %v249 = vld [vmem:[%s211] sm:$0xff]
        %v250 = vld [vmem:[%s220] sm:$0xff]
        %v251 = vld [vmem:[%s2] sm:$0xff]
        %253 = vset.pattern.permute.xlu0 0
        %254 = vperm.xlu0 %253, %v251
        %v255 = vpop.permute.xlu0 %254
        %v257 = vmul.f32 %v249, %v255
        %v258 = vadd.f32 %v257, 0.0
        %259 = vset.pattern.permute.xlu0 1
        %260 = vperm.xlu0 %259, %v251
        %v261 = vpop.permute.xlu0 %260
        %v263 = vmul.f32 %v249, %v261
        %v264 = vmul.f32 %v250, %v261
        %267 = vrot.lane.b32.xlu0 %v263, 127
        %v268 = vpop.permute.xlu0 %267
        %269 = vrot.lane.b32.xlu0 %v264, 127
        %v270 = vpop.permute.xlu0 %269
        %vm271 = vcmask 1039360
        %v272 = vsel %vm271, %v268, %v270
        %v274 = vadd.f32 %v258, %v272
        %275 = vset.pattern.permute.xlu0 2
        %276 = vperm.xlu0 %275, %v251
        %v277 = vpop.permute.xlu0 %276
        %v279 = vmul.f32 %v249, %v277
        %v280 = vmul.f32 %v250, %v277
        %283 = vrot.lane.b32.xlu0 %v279, 126
        %v284 = vpop.permute.xlu0 %283
        %285 = vrot.lane.b32.xlu0 %v280, 126
        %v286 = vpop.permute.xlu0 %285
        %vm287 = vcmask 1031168
        %v288 = vsel %vm287, %v284, %v286
        %v290 = vadd.f32 %v274, %v288
        %291 = vst [vmem:[%s247] sm:$0xff] %v290
        %s292 = sand.u32 %s124, 1
        %s293 = scalar_lea.sflag [#allocation4], %s292
        %s294 = sand.u32 %s124, 1
        %s295 = smul.addr %s294, 8
        %s296 = scalar_lea.vmem [#allocation7], %s295
        // Predicated region
        $region41: #{tpu_custom_call.1} parent=31 // pred_check
          %p297 = pneg %p134
        $region42: #{tpu_custom_call.1} parent=31 // pred_check_branch
          %299 = sbr.rel (%p297) target = $region44
        $region43: #{tpu_custom_call.1} parent=31 // pred_region
          %s301 = ssub.s32 128, 128
          %302 = vsyncadd %s293, %s301
          %s303 = sadd.s32 %s28, %s27
          %s304 = smul.addr %s303, 128
          %s305 = scalar_lea.hbm %s3, %s304
          %s307 = sshll.u32 %s296, 4
          %s308 = int_to_ptr.vmem [resolvable:$true] %s307
          %310 = dma.vmem_to_hbm [thread:$0]  %s308, 128, %s305, %s293
        $region44: #{tpu_custom_call.1} parent=31 // pred_fallthru
          _
      $region32: #{tpu_custom_call.1} parent=5 // pred_fallthru
        _
      %p311 = scmp.le.s32.totalorder 2, %s18
      // Predicated region
      $region45: #{tpu_custom_call.1} parent=5 // pred_check
        %p312 = pneg %p311
      $region46: #{tpu_custom_call.1} parent=5 // pred_check_branch
        %314 = sbr.rel (%p312) target = $region48
      $region47: #{tpu_custom_call.1} parent=5 // pred_region
        %s315 = ssub.s32 %s18, 2
        // Predicated region
        $region49: #{tpu_custom_call.1} parent=47 // pred_check
          %p316 = pneg %p140
        $region50: #{tpu_custom_call.1} parent=47 // pred_check_branch
          %318 = sbr.rel (%p316) target = $region52
        $region51: #{tpu_custom_call.1} parent=47 // pred_region
          %s319 = sand.u32 %s125, 1
          %s320 = scalar_lea.sflag [#allocation4], %s319
          %s321 = sand.u32 %s125, 1
          %s322 = smul.addr %s321, 8
          %s323 = scalar_lea.vmem [#allocation7], %s322
          %324 = dma.done %s320, 128
        $region52: #{tpu_custom_call.1} parent=47 // pred_fallthru
          _
      $region48: #{tpu_custom_call.1} parent=5 // pred_fallthru
        _
    $region6: #{tpu_custom_call.1} parent=1 // loop_footer
      %s22 = sadd.s32 1, %s18
    $region7: #{tpu_custom_call.1} parent=1 // loop_footer_branch
      %17 = sbr.rel target = $region3
    $region8: #{tpu_custom_call.1} parent=1 // loop_exit
      _
    %325 = vsyncpa [#allocation3], 1
    %s326 = scalar_lea.sflag [#allocation3], 1
    %327 = vsyncpa %s326, 1
    %328 = vsyncpa [#allocation6], 1
    %s329 = scalar_lea.sflag [#allocation6], 1
    %330 = vsyncpa %s329, 1
    %331 = vsyncpa [#allocation4], 1
    %s332 = scalar_lea.sflag [#allocation4], 1
    %333 = vsyncpa %s332, 1

</llo_original>
